<compile_context>
chip_gen: v5e
topology: v5e:2x2
jax: 0.10.0
libtpu: 0.0.40
codegen_flags: <defaults>
</compile_context>

<pallas_src>
import functools

import jax
import jax.numpy as jnp
from jax.experimental import pallas as pl
from jax.experimental.pallas import tpu as pltpu


# --------------------- kernel 1: fused typed projection (+ attention proj) ---------------------

def _proj_kernel(x_ref, m_ref, w_ref, b_ref, h_ref, s_ref, *, num_node_type, d_out):
    x = x_ref[0]                                       # (TM, Din)
    mask = m_ref[0]                                    # (TM, T)
    # One lane-dense MXU pass: columns = [W_0 | .. | W_{T-1} | W_0@a_w | .. | W_{T-1}@a_w].
    proj = jnp.dot(x, w_ref[...], preferred_element_type=jnp.float32)
    s_off = num_node_type * d_out
    h = jnp.zeros((x.shape[0], d_out), jnp.float32)
    s = jnp.zeros((x.shape[0], 2), jnp.float32)
    for t in range(num_node_type):
        mt = mask[:, t:t + 1]
        h = h + (proj[:, t * d_out:(t + 1) * d_out] + b_ref[t:t + 1, :d_out]) * mt
        s = s + (proj[:, s_off + 2 * t:s_off + 2 * t + 2] + b_ref[t:t + 1, d_out:]) * mt
    h_ref[0] = h                                       # typed projection h
    s_ref[0] = s                                       # [a1.h_i, a2.h_i]


# --------------------- kernel 2: scores, masked softmax, aggregation ---------------------

def _attn_kernel(adj_ref, h_ref, s1_ref, s2_ref, ea2_ref, emb_ref, out_ref, *,
                 num_emb, alpha, n_real, n_cols, tm, d_out):
    adj = adj_ref[0].astype(jnp.int32)                 # widen int8 -> int32 once per tile
    s1 = s1_ref[0]                                     # (TM, 1)  a1.h_i + attention bias
    s2 = s2_ref[0]                                     # (1, Nc)  a2.h_j (row layout)
    ea2 = ea2_ref[...]                                 # (1, K)   a2.E[k]

    # Per-edge-type masks computed once and reused by the score and aggregation loops.
    # k == 0 is never needed: its score entries are masked to -9e15 anyway, and its
    # aggregation weight is 1 - sum_{k>0} wk (attention rows sum to 1).
    masks = [(adj == k).astype(jnp.float32) for k in range(1, num_emb)]

    pe = jnp.zeros((tm, n_cols), jnp.float32)
    for k in range(1, num_emb):
        pe = pe + masks[k - 1] * ea2[0:1, k:k + 1]

    score = s1 + s2 + pe
    score = jnp.where(score > 0, score, alpha * score)                # LeakyReLU
    masked = jnp.where(adj > 0, score, jnp.float32(-9.0e15))
    if n_cols != n_real:
        # Padded neighbour columns get -inf so rows with no real edges still normalize
        # over the n_real real columns only (matches the torch -9e15 semantics exactly).
        col = jax.lax.broadcasted_iota(jnp.int32, (tm, n_cols), 1)
        masked = jnp.where(col < n_real, masked, -jnp.inf)

    m = jnp.max(masked, axis=1, keepdims=True)
    e = jnp.exp(masked - m)
    denom = jnp.sum(e, axis=1, keepdims=True)
    # TODO(synk): pl.reciprocal(..., approx=True) would route to the EUP but loosens accuracy
    #             past the 1e-4 validation tolerance; kept exact.
    attn = e * pl.reciprocal(denom)                                   # (TM, Nc)

    # out[i] = sum_j attn[i,j] * (h[j] + E[adj[i,j]])
    #        = (attn @ h)[i] + sum_k (sum_j attn[i,j]*[adj[i,j]==k]) * E[k]
    out = jnp.dot(attn, h_ref[0], preferred_element_type=jnp.float32)  # (TM, Dout) on MXU
    emb = emb_ref[...]                                                 # (K, Dout)
    wsum = jnp.zeros((tm, 1), jnp.float32)
    for k in range(1, num_emb):
        wk = jnp.sum(attn * masks[k - 1], axis=1, keepdims=True)       # reuse mask
        wsum = wsum + wk
        out = out + wk * emb[k:k + 1, :]
    out = out + (1.0 - wsum) * emb[0:1, :]                             # edge-type 0 weight

    # ELU (exp only sees the non-positive branch values).
    out_ref[0] = jnp.where(out > 0, out, jnp.exp(jnp.minimum(out, 0.0)) - 1.0)


# ---------------------------------------- wrapper ----------------------------------------

def _vmem_capacity_bytes():
    try:
        return int(pltpu.get_tpu_info().vmem_capacity_bytes)
    except Exception:  # interpret mode / CPU / older jax
        return 64 << 20                               # conservative: v7x per-TensorCore VMEM


def _row_tile_and_pad(n, d_out, num_emb, row_tile_cap):
    """Generation-aware row tile, sized for the attention kernel's per-step VMEM live set."""
    budget = _vmem_capacity_bytes() // 2              # headroom for pipeline/compiler scratch
    # Per tile row (bytes): int8 adj x2 (double buffer) + widened int32 adj
    #   + (K-1) reusable f32 masks + ~5 live f32 (TM,N) temporaries + f32 out tile x2.
    per_row = n * (2 + 4 + (num_emb - 1 + 5) * 4) + d_out * 4 * 2
    fixed = 2 * n * d_out * 4 + 4 * n * 4 + (1 << 20)  # h (x2 buffered), s2/ea2/emb, slack
    cap = max((budget - fixed) // max(per_row, 1), 32)
    cap = min(int(cap), int(row_tile_cap))
    if n <= cap:
        return n, n                                   # single tile, no padding needed
    tm = max(int(cap) // 32 * 32, 32)                 # multiple of 32 (int8 sublane packing)
    n_pad = ((n + tm - 1) // tm) * tm                 # pad instead of the old TM=N fallback
    return tm, n_pad


def gat_forward(node_rep, node_type_mask_rep, adj, params, *, alpha, row_tile=512):
    B, N, Din = node_rep.shape
    W = params["W"]          # (T, Din, Dout)
    b = params["b"]          # (T, 1, Dout)
    aw = params["a_w"]       # (Dout, 2)  columns: [a1 (for h_i), a2 (for h_j + e_ij)]
    ab = params["a_b"]       # (1, 1)
    E = params["E"]          # (K, Dout)
    T, _, Dout = W.shape
    K = E.shape[0]

    # ---- tiny precompute / layout glue (outside the kernels) ----
    # torch: node_type_mask_rep.view(T, B, N, 1) is a raw reshape of the (B, T, N, 1) input.
    mask_bnt = jnp.transpose(node_type_mask_rep.reshape(T, B, N), (1, 2, 0)).astype(jnp.float32)
    w_f32 = W.astype(jnp.float32)
    aw_f32 = aw.astype(jnp.float32)
    # Augmented projection weights: [W_0 .. W_{T-1} | W_0@a_w .. W_{T-1}@a_w] -> (Din, T*Dout+2T)
    Wcat = jnp.transpose(w_f32, (1, 0, 2)).reshape(Din, T * Dout)
    Wa = jnp.transpose(jnp.einsum("tdo,oc->tdc", w_f32, aw_f32), (1, 0, 2)).reshape(Din, 2 * T)
    Waug = jnp.concatenate([Wcat, Wa], axis=1)
    b_f32 = b.reshape(T, Dout).astype(jnp.float32)
    baug = jnp.concatenate([b_f32, b_f32 @ aw_f32], axis=1)              # (T, Dout + 2)
    ea2 = (E.astype(jnp.float32) @ aw_f32[:, 1:2]).reshape(1, K)         # a2 . E[k]

    TM, Np = _row_tile_and_pad(N, Dout, K, row_tile)
    NT = Np // TM

    x = node_rep.astype(jnp.float32)
    adj_s = adj.astype(jnp.int8 if K <= 127 else jnp.int32)              # 4x smaller adj stream
    if Np > N:
        pad = Np - N
        x = jnp.pad(x, ((0, 0), (0, pad), (0, 0)))
        mask_bnt = jnp.pad(mask_bnt, ((0, 0), (0, pad), (0, 0)))         # zero mask => h=0 rows
        adj_s = jnp.pad(adj_s, ((0, 0), (0, pad), (0, pad)))             # zero => no edge

    cparams = pltpu.CompilerParams(
        dimension_semantics=("parallel", "parallel"),                     # no carry -> both parallel
        vmem_limit_bytes=int(_vmem_capacity_bytes() * 0.9))

    # ---- kernel 1: fused typed projection + attention projections ----
    proj_kernel = functools.partial(_proj_kernel, num_node_type=T, d_out=Dout)
    h, s12 = pl.pallas_call(
        proj_kernel,
        out_shape=(jax.ShapeDtypeStruct((B, Np, Dout), jnp.float32),
                   jax.ShapeDtypeStruct((B, Np, 2), jnp.float32)),
        grid_spec=pltpu.PrefetchScalarGridSpec(
            num_scalar_prefetch=0,
            grid=(B, NT),
            in_specs=[
                pl.BlockSpec((1, TM, Din), lambda bi, ti: (bi, ti, 0)),   # node rows
                pl.BlockSpec((1, TM, T), lambda bi, ti: (bi, ti, 0)),     # node-type mask rows
                pl.BlockSpec((Din, T * Dout + 2 * T), lambda bi, ti: (0, 0)),
                pl.BlockSpec((T, Dout + 2), lambda bi, ti: (0, 0)),
            ],
            out_specs=[
                pl.BlockSpec((1, TM, Dout), lambda bi, ti: (bi, ti, 0)),  # h
                pl.BlockSpec((1, TM, 2), lambda bi, ti: (bi, ti, 0)),     # [a1.h, a2.h]
            ]),
        compiler_params=cparams,
    )(x, mask_bnt, Waug, baug)

    s1 = s12[:, :, 0:1] + ab.astype(jnp.float32)[0, 0]                   # (B, Np, 1) incl. bias
    s2 = jnp.swapaxes(s12[:, :, 1:2], 1, 2)                              # (B, 1, Np) row layout

    # ---- kernel 2: attention scores, masked softmax, aggregation ----
    attn_kernel = functools.partial(_attn_kernel, num_emb=K, alpha=alpha,
                                    n_real=N, n_cols=Np, tm=TM, d_out=Dout)
    out = pl.pallas_call(
        attn_kernel,
        out_shape=jax.ShapeDtypeStruct((B, Np, Dout), jnp.float32),
        grid_spec=pltpu.PrefetchScalarGridSpec(
            num_scalar_prefetch=0,
            grid=(B, NT),
            in_specs=[
                pl.BlockSpec((1, TM, Np), lambda bi, ti: (bi, ti, 0)),    # adj row tile (int8)
                pl.BlockSpec((1, Np, Dout), lambda bi, ti: (bi, 0, 0)),   # h (per batch, reused)
                pl.BlockSpec((1, TM, 1), lambda bi, ti: (bi, ti, 0)),     # a1.h_i + bias
                pl.BlockSpec((1, 1, Np), lambda bi, ti: (bi, 0, 0)),      # a2.h_j (row layout)
                pl.BlockSpec((1, K), lambda bi, ti: (0, 0)),              # a2.E
                pl.BlockSpec((K, Dout), lambda bi, ti: (0, 0)),           # edge-type embeddings
            ],
            out_specs=pl.BlockSpec((1, TM, Dout), lambda bi, ti: (bi, ti, 0))),
        compiler_params=cparams,
    )(adj_s, h, s1, s2, ea2, E.astype(jnp.float32))

    return out[:, :N, :]


# ------------------------------------ pure-JAX reference ------------------------------------

def gat_reference(node_rep, node_type_mask_rep, adj, params, *, alpha):
    """Pure-JAX reference mirroring the PyTorch forward exactly (eval-mode dropout)."""
    B, N, _ = node_rep.shape
    W, b, aw, ab, E = params["W"], params["b"], params["a_w"], params["a_b"], params["E"]
    T, _, Dout = W.shape
    mask = node_type_mask_rep.reshape(T, B, N, 1)
    h = jnp.zeros((B, N, Dout), jnp.float32)
    for t in range(T):
        h = h + (node_rep @ W[t] + b[t]) * mask[t]
    emb = E[adj.reshape(B, N * N)]                                           # (B, N*N, Dout)
    x2 = (h.reshape(B, 1, N * Dout) + emb.reshape(B, N, N * Dout)).reshape(B, N * N, Dout)
    x1 = jnp.tile(h, (1, 1, N)).reshape(B, N * N, Dout)
    cat = jnp.concatenate([x1, x2], axis=2)                                  # (B, N*N, 2*Dout)
    a_full = jnp.concatenate([aw[:, 0], aw[:, 1]])                           # (2*Dout,)
    scores = (cat @ a_full + ab[0, 0]).reshape(B, N, N)
    scores = jnp.where(scores > 0, scores, alpha * scores)                   # LeakyReLU
    masked = jnp.where(adj > 0, scores, jnp.float32(-9.0e15))
    attn = jax.nn.softmax(masked, axis=2)
    out = jnp.einsum("bij,bijf->bif", attn, x2.reshape(B, N, N, Dout))
    return jnp.where(out > 0, out, jnp.exp(out) - 1.0)                       # ELU


if __name__ == "__main__":
    # Small, module-consistent shapes.
    B, N = 2, 8
    in_features, out_features = 16, 32
    num_node_type, num_edge_type = 3, 5
    alpha = 0.2

    key = jax.random.PRNGKey(0)
    k_x, k_type, k_adj, k_w, k_a, k_e = jax.random.split(key, 6)

    node_rep = jax.random.normal(k_x, (B, N, in_features), jnp.float32)

    # One-hot node-type mask, given in the module's documented (B, T, N, 1) layout.
    node_types = jax.random.randint(k_type, (B, N), 0, num_node_type)
    node_type_mask_rep = (
        jax.nn.one_hot(node_types, num_node_type, dtype=jnp.float32)
        .transpose(0, 2, 1)[..., None]                                       # (B, T, N, 1)
    )

    # Integer edge types in [0, num_edge_type]; 0 means no edge.
    adj = jax.random.randint(k_adj, (B, N, N), 0, num_edge_type + 1).astype(jnp.int32)

    # Deterministic parameters (xavier-style uniform weights, zero biases,
    # normal edge-type embeddings with padding row 0 zeroed).
    limit_w = (6.0 / (in_features + out_features)) ** 0.5
    W = jax.random.uniform(k_w, (num_node_type, in_features, out_features),
                           jnp.float32, -limit_w, limit_w)
    b = jnp.zeros((num_node_type, 1, out_features), jnp.float32)
    limit_a = (6.0 / (2 * out_features + 1)) ** 0.5
    a_w = jax.random.uniform(k_a, (out_features, 2), jnp.float32, -limit_a, limit_a)
    a_b = jnp.zeros((1, 1), jnp.float32)
    E = jax.random.normal(k_e, (num_edge_type + 1, out_features), jnp.float32)
    E = E.at[0].set(0.0)                                                     # padding_idx=0

    params = {"W": W, "b": b, "a_w": a_w, "a_b": a_b, "E": E}

    out = gat_forward(node_rep, node_type_mask_rep, adj, params, alpha=alpha)
    out = jax.block_until_ready(out)

    ref = gat_reference(node_rep, node_type_mask_rep, adj, params, alpha=alpha)
    if not jnp.allclose(out, ref, rtol=1e-4, atol=1e-4):
        raise AssertionError("Pallas GAT kernel does not match JAX reference")

    print("KERNEL_OK")
</pallas_src>

<mosaic_0001>
module attributes {stable_mosaic.version = 11 : i64} {
  func.func @_proj_kernel(%arg0: i32, %arg1: i32, %arg2: memref<1x8x16xf32, #tpu.memory_space<vmem>>, %arg3: memref<1x8x3xf32, #tpu.memory_space<vmem>>, %arg4: memref<16x102xf32, #tpu.memory_space<vmem>>, %arg5: memref<3x34xf32, #tpu.memory_space<vmem>>, %arg6: memref<1x8x32xf32, #tpu.memory_space<vmem>>, %arg7: memref<1x8x2xf32, #tpu.memory_space<vmem>>) attributes {dimension_semantics = [#tpu.dimension_semantics<parallel>, #tpu.dimension_semantics<parallel>], iteration_bounds = array<i64: 2, 1>, scalar_prefetch = 0 : i64, scratch_operands = 0 : i64, tpu.core_type = #tpu.core_type<tc>, window_params = [{transform_indices = @transform_0, window_bounds = array<i64: 1, 8, 16>}, {transform_indices = @transform_1, window_bounds = array<i64: 1, 8, 3>}, {pipeline_mode = #tpu.pipeline_mode<synchronous>, transform_indices = @transform_2, window_bounds = array<i64: 16, 102>}, {pipeline_mode = #tpu.pipeline_mode<synchronous>, transform_indices = @transform_3, window_bounds = array<i64: 3, 34>}, {transform_indices = @transform_4, window_bounds = array<i64: 1, 8, 32>}, {transform_indices = @transform_5, window_bounds = array<i64: 1, 8, 2>}]} {
    %c0 = arith.constant 0 : index
    %c0_0 = arith.constant 0 : index
    %c0_1 = arith.constant 0 : index
    %0 = vector.load %arg2[%c0, %c0_0, %c0_1] : memref<1x8x16xf32, #tpu.memory_space<vmem>>, vector<1x8x16xf32>
    %1 = vector.shape_cast %0 : vector<1x8x16xf32> to vector<8x16xf32>
    %c0_2 = arith.constant 0 : index
    %c0_3 = arith.constant 0 : index
    %c0_4 = arith.constant 0 : index
    %2 = vector.load %arg3[%c0_2, %c0_3, %c0_4] : memref<1x8x3xf32, #tpu.memory_space<vmem>>, vector<1x8x3xf32>
    %3 = vector.shape_cast %2 : vector<1x8x3xf32> to vector<8x3xf32>
    %c0_5 = arith.constant 0 : index
    %c0_6 = arith.constant 0 : index
    %4 = vector.load %arg4[%c0_5, %c0_6] : memref<16x102xf32, #tpu.memory_space<vmem>>, vector<16x102xf32>
    %cst = arith.constant dense<0.000000e+00> : vector<8x102xf32>
    %5 = tpu.matmul %1, %4, %cst {dimension_numbers = #tpu.dot_dimension_numbers<[1], [0], [0], [1], [0, 0, 1, 1], [], []>} : vector<8x16xf32>, vector<16x102xf32>, vector<8x102xf32> -> vector<8x102xf32>
    %cst_7 = arith.constant 0.000000e+00 : f32
    %6 = vector.broadcast %cst_7 : f32 to vector<8x32xf32>
    %cst_8 = arith.constant 0.000000e+00 : f32
    %7 = vector.broadcast %cst_8 : f32 to vector<8x2xf32>
    %8 = vector.extract_strided_slice %3 {offsets = [0, 0], sizes = [8, 1], strides = [1, 1]} : vector<8x3xf32> to vector<8x1xf32>
    %9 = vector.extract_strided_slice %5 {offsets = [0, 0], sizes = [8, 32], strides = [1, 1]} : vector<8x102xf32> to vector<8x32xf32>
    %c0_9 = arith.constant 0 : index
    %c0_10 = arith.constant 0 : index
    %10 = vector.load %arg5[%c0_9, %c0_10] : memref<3x34xf32, #tpu.memory_space<vmem>>, vector<1x32xf32>
    %11 = vector.broadcast %10 : vector<1x32xf32> to vector<8x32xf32>
    %12 = arith.addf %9, %11 : vector<8x32xf32>
    %13 = vector.broadcast %8 : vector<8x1xf32> to vector<8x32xf32>
    %14 = arith.mulf %12, %13 : vector<8x32xf32>
    %15 = arith.addf %6, %14 : vector<8x32xf32>
    %16 = vector.extract_strided_slice %5 {offsets = [0, 96], sizes = [8, 2], strides = [1, 1]} : vector<8x102xf32> to vector<8x2xf32>
    %c0_11 = arith.constant 0 : index
    %c32 = arith.constant 32 : index
    %17 = vector.load %arg5[%c0_11, %c32] : memref<3x34xf32, #tpu.memory_space<vmem>>, vector<1x2xf32>
    %18 = vector.broadcast %17 : vector<1x2xf32> to vector<8x2xf32>
    %19 = arith.addf %16, %18 : vector<8x2xf32>
    %20 = vector.broadcast %8 : vector<8x1xf32> to vector<8x2xf32>
    %21 = arith.mulf %19, %20 : vector<8x2xf32>
    %22 = arith.addf %7, %21 : vector<8x2xf32>
    %23 = vector.extract_strided_slice %3 {offsets = [0, 1], sizes = [8, 1], strides = [1, 1]} : vector<8x3xf32> to vector<8x1xf32>
    %24 = vector.extract_strided_slice %5 {offsets = [0, 32], sizes = [8, 32], strides = [1, 1]} : vector<8x102xf32> to vector<8x32xf32>
    %c1 = arith.constant 1 : index
    %c0_12 = arith.constant 0 : index
    %25 = vector.load %arg5[%c1, %c0_12] : memref<3x34xf32, #tpu.memory_space<vmem>>, vector<1x32xf32>
    %26 = vector.broadcast %25 : vector<1x32xf32> to vector<8x32xf32>
    %27 = arith.addf %24, %26 : vector<8x32xf32>
    %28 = vector.broadcast %23 : vector<8x1xf32> to vector<8x32xf32>
    %29 = arith.mulf %27, %28 : vector<8x32xf32>
    %30 = arith.addf %15, %29 : vector<8x32xf32>
    %31 = vector.extract_strided_slice %5 {offsets = [0, 98], sizes = [8, 2], strides = [1, 1]} : vector<8x102xf32> to vector<8x2xf32>
    %c1_13 = arith.constant 1 : index
    %c32_14 = arith.constant 32 : index
    %32 = vector.load %arg5[%c1_13, %c32_14] : memref<3x34xf32, #tpu.memory_space<vmem>>, vector<1x2xf32>
    %33 = vector.broadcast %32 : vector<1x2xf32> to vector<8x2xf32>
    %34 = arith.addf %31, %33 : vector<8x2xf32>
    %35 = vector.broadcast %23 : vector<8x1xf32> to vector<8x2xf32>
    %36 = arith.mulf %34, %35 : vector<8x2xf32>
    %37 = arith.addf %22, %36 : vector<8x2xf32>
    %38 = vector.extract_strided_slice %3 {offsets = [0, 2], sizes = [8, 1], strides = [1, 1]} : vector<8x3xf32> to vector<8x1xf32>
    %39 = vector.extract_strided_slice %5 {offsets = [0, 64], sizes = [8, 32], strides = [1, 1]} : vector<8x102xf32> to vector<8x32xf32>
    %c2 = arith.constant 2 : index
    %c0_15 = arith.constant 0 : index
    %40 = vector.load %arg5[%c2, %c0_15] : memref<3x34xf32, #tpu.memory_space<vmem>>, vector<1x32xf32>
    %41 = vector.broadcast %40 : vector<1x32xf32> to vector<8x32xf32>
    %42 = arith.addf %39, %41 : vector<8x32xf32>
    %43 = vector.broadcast %38 : vector<8x1xf32> to vector<8x32xf32>
    %44 = arith.mulf %42, %43 : vector<8x32xf32>
    %45 = arith.addf %30, %44 : vector<8x32xf32>
    %46 = vector.extract_strided_slice %5 {offsets = [0, 100], sizes = [8, 2], strides = [1, 1]} : vector<8x102xf32> to vector<8x2xf32>
    %c2_16 = arith.constant 2 : index
    %c32_17 = arith.constant 32 : index
    %47 = vector.load %arg5[%c2_16, %c32_17] : memref<3x34xf32, #tpu.memory_space<vmem>>, vector<1x2xf32>
    %48 = vector.broadcast %47 : vector<1x2xf32> to vector<8x2xf32>
    %49 = arith.addf %46, %48 : vector<8x2xf32>
    %50 = vector.broadcast %38 : vector<8x1xf32> to vector<8x2xf32>
    %51 = arith.mulf %49, %50 : vector<8x2xf32>
    %52 = arith.addf %37, %51 : vector<8x2xf32>
    %c0_18 = arith.constant 0 : index
    %c0_19 = arith.constant 0 : index
    %c0_20 = arith.constant 0 : index
    %53 = vector.load %arg6[%c0_18, %c0_19, %c0_20] : memref<1x8x32xf32, #tpu.memory_space<vmem>>, vector<1x8x32xf32>
    %54 = vector.shape_cast %53 : vector<1x8x32xf32> to vector<8x32xf32>
    %55 = vector.shape_cast %45 : vector<8x32xf32> to vector<1x8x32xf32>
    tpu.vector_store %arg6[%c0_18, %c0_19, %c0_20], %55 {strides = array<i32>} : memref<1x8x32xf32, #tpu.memory_space<vmem>>, vector<1x8x32xf32>,
    %c0_21 = arith.constant 0 : index
    %c0_22 = arith.constant 0 : index
    %c0_23 = arith.constant 0 : index
    %56 = vector.load %arg7[%c0_21, %c0_22, %c0_23] : memref<1x8x2xf32, #tpu.memory_space<vmem>>, vector<1x8x2xf32>
    %57 = vector.shape_cast %56 : vector<1x8x2xf32> to vector<8x2xf32>
    %58 = vector.shape_cast %52 : vector<8x2xf32> to vector<1x8x2xf32>
    tpu.vector_store %arg7[%c0_21, %c0_22, %c0_23], %58 {strides = array<i32>} : memref<1x8x2xf32, #tpu.memory_space<vmem>>, vector<1x8x2xf32>,
    return
  }
  func.func @transform_0(%arg0: i32, %arg1: i32) -> (i32, i32, i32) {
    %c0_i32 = arith.constant 0 : i32
    %c0_i32_0 = arith.constant 0 : i32
    return %arg0, %arg1, %c0_i32 : i32, i32, i32
  }
  func.func @transform_1(%arg0: i32, %arg1: i32) -> (i32, i32, i32) {
    %c0_i32 = arith.constant 0 : i32
    %c0_i32_0 = arith.constant 0 : i32
    return %arg0, %arg1, %c0_i32 : i32, i32, i32
  }
  func.func @transform_2(%arg0: i32, %arg1: i32) -> (i32, i32) {
    %c0_i32 = arith.constant 0 : i32
    %c0_i32_0 = arith.constant 0 : i32
    %c0_i32_1 = arith.constant 0 : i32
    return %c0_i32, %c0_i32_0 : i32, i32
  }
  func.func @transform_3(%arg0: i32, %arg1: i32) -> (i32, i32) {
    %c0_i32 = arith.constant 0 : i32
    %c0_i32_0 = arith.constant 0 : i32
    %c0_i32_1 = arith.constant 0 : i32
    return %c0_i32, %c0_i32_0 : i32, i32
  }
  func.func @transform_4(%arg0: i32, %arg1: i32) -> (i32, i32, i32) {
    %c0_i32 = arith.constant 0 : i32
    %c0_i32_0 = arith.constant 0 : i32
    return %arg0, %arg1, %c0_i32 : i32, i32, i32
  }
  func.func @transform_5(%arg0: i32, %arg1: i32) -> (i32, i32, i32) {
    %c0_i32 = arith.constant 0 : i32
    %c0_i32_0 = arith.constant 0 : i32
    return %arg0, %arg1, %c0_i32 : i32, i32, i32
  }
}

</mosaic_0001>

<llo_original>
// kernel: tpu_custom_call.1
$region0: #{tpu_custom_call.1}
  #allocation0 [shape = 'u32[]', space=smem, size = 0x4, offset = 0x4, fixed_abs, tag = 'smem constant byte address 0x4 - core index']
  #allocation1 [shape = 'u32[72,128]{1,0:T(1,128)}', space=vmem, size = 0x9000, scoped, tag = 'internal scratch']
  %s0 = inlined_call_operand.vmem [shape: f32[2,8,16], index: 0, kind: input, shape index: {}]
  %s1 = inlined_call_operand.vmem [shape: f32[2,8,3], index: 1, kind: input, shape index: {}]
  %s2 = inlined_call_operand.hbm [shape: f32[16,102], index: 2, kind: input, shape index: {}]
  %s3 = inlined_call_operand.vmem [shape: f32[3,34], index: 3, kind: input, shape index: {}]
  %s4 = inlined_call_operand.hbm [shape: f32[2,8,32], index: 4, kind: output, shape index: {0}]
  %s5 = inlined_call_operand.vmem [shape: f32[2,8,2], index: 5, kind: output, shape index: {1}]
  %6 = xla_tuple %s4, %s5
  %s7 = sld [smem:[#allocation0]]
  $region61: #{tpu_custom_call.1} parent=0
    _
  %s9 = ssub.s32 1, %s7
  %s10 = scalar_select 0, %s9, %s7
  $region1: #{tpu_custom_call.1} parent=0
    #allocation2 [shape = 'u8[8192]{0}', space=vmem, size = 0x2000, scoped, tag = 'input window, operand 2, single buffered']
    #allocation3 [shape = 's32[2]{0}', space=sflag, size = 0x8, scoped, tag = 'scoped memory for tpu_custom_call.1']
    #allocation4 [shape = 's32[2]{0}', space=sflag, size = 0x8, scoped, tag = 'scoped memory for tpu_custom_call.1']
    #allocation5 [shape = 'u8[8192]{0}', space=vmem, size = 0x2000, scoped, tag = 'output window, operand 0']
    %11 = vsyncpa [#allocation3], 0
    %12 = vsyncpa [#allocation4], 0
    %s13 = scalar_lea.sflag [#allocation4], 1
    %14 = vsyncpa %s13, 0
    loop: start=0, step=1, limit=4
    $region2: #{tpu_custom_call.1} parent=1 // loop_pre_header
      _
    $region3: #{tpu_custom_call.1} parent=1 // loop_header
      %s16 = sphi 0, %s20
      %p17 = scmp.ge.s32.totalorder %s16, 4
      %s23 = sphi 0, %s35
      %s24 = sphi 0, %s31
      %s25 = sphi 0, %s23
      %s26 = sphi 0, %s24
      %s27 = sphi 0, %s25
      %s28 = sphi 0, %s26
      %s40 = sphi 0, %s42
      %s43 = sphi 0, %s40
      %s44 = sphi 0, %s43
      %s60 = sphi 0, %s44
      %s68 = sphi 0, %s70
      %s71 = sphi 0, %s68
      %s72 = sphi 0, %s71
      %s88 = sphi 0, %s72
      %s92 = sphi 0, %s92
      %s94 = sphi 0, %s92
      %s95 = sphi 0, %s94
      %s109 = sphi 0, %s95
      %s113 = sphi 0, %s113
      %s115 = sphi 0, %s113
      %s116 = sphi 0, %s115
      %s130 = sphi 0, %s116
      %s138 = sphi 0, %s140
      %s141 = sphi 0, %s138
      %s142 = sphi 0, %s141
      %s158 = sphi 0, %s142
      %s166 = sphi 0, %s168
      %s169 = sphi 0, %s166
      %s170 = sphi 0, %s169
      %s186 = sphi 0, %s170
    $region4: #{tpu_custom_call.1} parent=1 // loop_header_branch
      %19 = sbr.rel (%p17) target = $region8
    $region5: #{tpu_custom_call.1} parent=1 // loop_body
      %s21 = ssub.s32 %s16, 1
      %s22 = ssub.s32 %s16, 2
      %s29 = sadd.s32 1, %s24
      %p30 = scmp.ge.s32.totalorder %s29, 1
      %s31 = scalar_select %p30, 0, %s29
      %s32 = sadd.s32 1, %s23
      %s33 = scalar_select %p30, %s32, %s23
      %p34 = scmp.ge.s32.totalorder %s33, 2
      %s35 = scalar_select %p34, 0, %s33
      %s36 = ssub.s32 %s23, %s35
      %s37 = ssub.s32 %s24, %s31
      %s38 = sor.u32 %s36, %s37
      %p39 = scmp.eq.s32.totalorder %s38, 0
      %s41 = sadd.s32 %s40, 1
      %s42 = scalar_select %p39, %s40, %s41
      %p45 = pneg %p39
      %p46 = scmp.eq.s32.totalorder %s16, 1
      %p47 = por %p45, %p46
      %p48 = scmp.ne.s32.totalorder %s40, %s43
      %p49 = scmp.eq.s32.totalorder %s16, 0
      %p50 = por %p48, %p49
      %p51 = scmp.ne.s32.totalorder %s40, %s43
      %p52 = scmp.eq.s32.totalorder %s21, 1
      %p53 = por %p51, %p52
      %p54 = scmp.ne.s32.totalorder %s43, %s44
      %p55 = scmp.eq.s32.totalorder %s21, 0
      %p56 = por %p54, %p55
      %p57 = scmp.ne.s32.totalorder %s43, %s44
      %p58 = scmp.eq.s32.totalorder %s22, 1
      %p59 = por %p57, %p58
      %p61 = scmp.ne.s32.totalorder %s44, %s60
      %p62 = scmp.eq.s32.totalorder %s22, 0
      %p63 = por %p61, %p62
      %s64 = ssub.s32 %s23, %s35
      %s65 = ssub.s32 %s24, %s31
      %s66 = sor.u32 %s64, %s65
      %p67 = scmp.eq.s32.totalorder %s66, 0
      %s69 = sadd.s32 %s68, 1
      %s70 = scalar_select %p67, %s68, %s69
      %p73 = pneg %p67
      %p74 = scmp.eq.s32.totalorder %s16, 1
      %p75 = por %p73, %p74
      %p76 = scmp.ne.s32.totalorder %s68, %s71
      %p77 = scmp.eq.s32.totalorder %s16, 0
      %p78 = por %p76, %p77
      %p79 = scmp.ne.s32.totalorder %s68, %s71
      %p80 = scmp.eq.s32.totalorder %s21, 1
      %p81 = por %p79, %p80
      %p82 = scmp.ne.s32.totalorder %s71, %s72
      %p83 = scmp.eq.s32.totalorder %s21, 0
      %p84 = por %p82, %p83
      %p85 = scmp.ne.s32.totalorder %s71, %s72
      %p86 = scmp.eq.s32.totalorder %s22, 1
      %p87 = por %p85, %p86
      %p89 = scmp.ne.s32.totalorder %s72, %s88
      %p90 = scmp.eq.s32.totalorder %s22, 0
      %p91 = por %p89, %p90
      %s93 = sadd.s32 %s92, 1
      %p96 = scmp.eq.s32.totalorder %s16, 1
      %p97 = scmp.ne.s32.totalorder %s92, %s94
      %p98 = scmp.eq.s32.totalorder %s16, 0
      %p99 = por %p97, %p98
      %p100 = scmp.ne.s32.totalorder %s92, %s94
      %p101 = scmp.eq.s32.totalorder %s21, 1
      %p102 = por %p100, %p101
      %p103 = scmp.ne.s32.totalorder %s94, %s95
      %p104 = scmp.eq.s32.totalorder %s21, 0
      %p105 = por %p103, %p104
      %p106 = scmp.ne.s32.totalorder %s94, %s95
      %p107 = scmp.eq.s32.totalorder %s22, 1
      %p108 = por %p106, %p107
      %p110 = scmp.ne.s32.totalorder %s95, %s109
      %p111 = scmp.eq.s32.totalorder %s22, 0
      %p112 = por %p110, %p111
      %s114 = sadd.s32 %s113, 1
      %p117 = scmp.eq.s32.totalorder %s16, 1
      %p118 = scmp.ne.s32.totalorder %s113, %s115
      %p119 = scmp.eq.s32.totalorder %s16, 0
      %p120 = por %p118, %p119
      %p121 = scmp.ne.s32.totalorder %s113, %s115
      %p122 = scmp.eq.s32.totalorder %s21, 1
      %p123 = por %p121, %p122
      %p124 = scmp.ne.s32.totalorder %s115, %s116
      %p125 = scmp.eq.s32.totalorder %s21, 0
      %p126 = por %p124, %p125
      %p127 = scmp.ne.s32.totalorder %s115, %s116
      %p128 = scmp.eq.s32.totalorder %s22, 1
      %p129 = por %p127, %p128
      %p131 = scmp.ne.s32.totalorder %s116, %s130
      %p132 = scmp.eq.s32.totalorder %s22, 0
      %p133 = por %p131, %p132
      %s134 = ssub.s32 %s23, %s35
      %s135 = ssub.s32 %s24, %s31
      %s136 = sor.u32 %s134, %s135
      %p137 = scmp.eq.s32.totalorder %s136, 0
      %s139 = sadd.s32 %s138, 1
      %s140 = scalar_select %p137, %s138, %s139
      %p143 = pneg %p137
      %p144 = scmp.eq.s32.totalorder %s16, 1
      %p145 = por %p143, %p144
      %p146 = scmp.ne.s32.totalorder %s138, %s141
      %p147 = scmp.eq.s32.totalorder %s16, 0
      %p148 = por %p146, %p147
      %p149 = scmp.ne.s32.totalorder %s138, %s141
      %p150 = scmp.eq.s32.totalorder %s21, 1
      %p151 = por %p149, %p150
      %p152 = scmp.ne.s32.totalorder %s141, %s142
      %p153 = scmp.eq.s32.totalorder %s21, 0
      %p154 = por %p152, %p153
      %p155 = scmp.ne.s32.totalorder %s141, %s142
      %p156 = scmp.eq.s32.totalorder %s22, 1
      %p157 = por %p155, %p156
      %p159 = scmp.ne.s32.totalorder %s142, %s158
      %p160 = scmp.eq.s32.totalorder %s22, 0
      %p161 = por %p159, %p160
      %s162 = ssub.s32 %s23, %s35
      %s163 = ssub.s32 %s24, %s31
      %s164 = sor.u32 %s162, %s163
      %p165 = scmp.eq.s32.totalorder %s164, 0
      %s167 = sadd.s32 %s166, 1
      %s168 = scalar_select %p165, %s166, %s167
      %p171 = pneg %p165
      %p172 = scmp.eq.s32.totalorder %s16, 1
      %p173 = por %p171, %p172
      %p174 = scmp.ne.s32.totalorder %s166, %s169
      %p175 = scmp.eq.s32.totalorder %s16, 0
      %p176 = por %p174, %p175
      %p177 = scmp.ne.s32.totalorder %s166, %s169
      %p178 = scmp.eq.s32.totalorder %s21, 1
      %p179 = por %p177, %p178
      %p180 = scmp.ne.s32.totalorder %s169, %s170
      %p181 = scmp.eq.s32.totalorder %s21, 0
      %p182 = por %p180, %p181
      %p183 = scmp.ne.s32.totalorder %s169, %s170
      %p184 = scmp.eq.s32.totalorder %s22, 1
      %p185 = por %p183, %p184
      %p187 = scmp.ne.s32.totalorder %s170, %s186
      %p188 = scmp.eq.s32.totalorder %s22, 0
      %p189 = por %p187, %p188
      %p190 = scmp.le.s32.totalorder 1, %s16
      %p191 = scmp.lt.s32.totalorder %s16, 3
      %p192 = pnand %p190, %p191
      %p193 = pneg %p192
      // Predicated region
      $region9: #{tpu_custom_call.1} parent=5 // pred_check
        _
      $region10: #{tpu_custom_call.1} parent=5 // pred_check_branch
        %195 = sbr.rel (%p192) target = $region12
      $region11: #{tpu_custom_call.1} parent=5 // pred_region
        %s196 = ssub.s32 %s16, 1
        // Predicated region
        $region13: #{tpu_custom_call.1} parent=11 // pred_check
          %p197 = pneg %p105
        $region14: #{tpu_custom_call.1} parent=11 // pred_check_branch
          %199 = sbr.rel (%p197) target = $region16
        $region15: #{tpu_custom_call.1} parent=11 // pred_region
          %201 = vsyncadd [#allocation3], 0
          %s202 = sshll.u32 %s2, 4
          %s203 = int_to_ptr.hbm [resolvable:$true] %s202
          %s204 = sshll.u32 [#allocation2], 4
          %s205 = int_to_ptr.vmem [resolvable:$true] %s204
          %210 = dma.hbm_to_vmem [thread:$0]  %s203, 256, %s205, [#allocation3], 128, 128, 8
        $region16: #{tpu_custom_call.1} parent=11 // pred_fallthru
          _
        // Predicated region
        $region17: #{tpu_custom_call.1} parent=11 // pred_check
          %p211 = pneg %p126
        $region18: #{tpu_custom_call.1} parent=11 // pred_check_branch
          %213 = sbr.rel (%p211) target = $region20
        $region19: #{tpu_custom_call.1} parent=11 // pred_region
          _
        $region20: #{tpu_custom_call.1} parent=11 // pred_fallthru
          _
      $region12: #{tpu_custom_call.1} parent=5 // pred_fallthru
        _
      %p214 = scmp.lt.s32.totalorder %s16, 2
      // Predicated region
      $region21: #{tpu_custom_call.1} parent=5 // pred_check
        %p215 = pneg %p214
      $region22: #{tpu_custom_call.1} parent=5 // pred_check_branch
        %217 = sbr.rel (%p215) target = $region24
      $region23: #{tpu_custom_call.1} parent=5 // pred_region
        // Predicated region
        $region25: #{tpu_custom_call.1} parent=23 // pred_check
          %p218 = pneg %p50
        $region26: #{tpu_custom_call.1} parent=23 // pred_check_branch
          %220 = sbr.rel (%p218) target = $region28
        $region27: #{tpu_custom_call.1} parent=23 // pred_region
          %p221 = scmp.lt.s32.totalorder %s23, 1
          %s222 = scalar_select %p221, %s23, 1
          %p223 = scmp.lt.s32.totalorder %s24, 0
          %s224 = scalar_select %p223, %s24, 0
          %s225 = sadd.s32 %s224, %s222
          %s226 = smul.addr %s225, 8
          %s227 = scalar_lea.vmem %s0, %s226
        $region28: #{tpu_custom_call.1} parent=23 // pred_fallthru
          _
        // Predicated region
        $region29: #{tpu_custom_call.1} parent=23 // pred_check
          %p228 = pneg %p78
        $region30: #{tpu_custom_call.1} parent=23 // pred_check_branch
          %230 = sbr.rel (%p228) target = $region32
        $region31: #{tpu_custom_call.1} parent=23 // pred_region
          %p231 = scmp.lt.s32.totalorder %s23, 1
          %s232 = scalar_select %p231, %s23, 1
          %p233 = scmp.lt.s32.totalorder %s24, 0
          %s234 = scalar_select %p233, %s24, 0
          %s235 = sadd.s32 %s234, %s232
          %s236 = smul.addr %s235, 8
          %s237 = scalar_lea.vmem %s1, %s236
        $region32: #{tpu_custom_call.1} parent=23 // pred_fallthru
          _
      $region24: #{tpu_custom_call.1} parent=5 // pred_fallthru
        _
      %p238 = scmp.le.s32.totalorder 1, %s16
      %p239 = scmp.lt.s32.totalorder %s16, 3
      %p240 = pnand %p238, %p239
      %p241 = pneg %p240
      // Predicated region
      $region33: #{tpu_custom_call.1} parent=5 // pred_check
        _
      $region34: #{tpu_custom_call.1} parent=5 // pred_check_branch
        %243 = sbr.rel (%p240) target = $region36
      $region35: #{tpu_custom_call.1} parent=5 // pred_region
        %s244 = ssub.s32 %s16, 1
        // Predicated region
        $region37: #{tpu_custom_call.1} parent=35 // pred_check
          %p245 = pneg %p105
        $region38: #{tpu_custom_call.1} parent=35 // pred_check_branch
          %247 = sbr.rel (%p245) target = $region40
        $region39: #{tpu_custom_call.1} parent=35 // pred_region
          %249 = dma.done [#allocation3], 256
        $region40: #{tpu_custom_call.1} parent=35 // pred_fallthru
          _
        %p250 = scmp.lt.s32.totalorder %s25, 1
        %s251 = scalar_select %p250, %s25, 1
        %p252 = scmp.lt.s32.totalorder %s26, 0
        %s253 = scalar_select %p252, %s26, 0
        %s254 = sadd.s32 %s253, %s251
        %s255 = smul.addr %s254, 8
        %s256 = scalar_lea.vmem %s0, %s255
        %p257 = pneg %p56
        %p258 = pneg %p53
        %p259 = scmp.lt.s32.totalorder %s25, 1
        %s260 = scalar_select %p259, %s25, 1
        %p261 = scmp.lt.s32.totalorder %s26, 0
        %s262 = scalar_select %p261, %s26, 0
        %s263 = sadd.s32 %s262, %s260
        %s264 = smul.addr %s263, 8
        %s265 = scalar_lea.vmem %s1, %s264
        %p266 = pneg %p84
        %p267 = pneg %p81
        %p268 = pneg %p105
        %p269 = pneg %p102
        %p270 = pneg %p126
        %p271 = pneg %p123
        %p272 = pneg %p154
        %p273 = pneg %p151
        %s274 = sand.u32 %s141, 1
        %s275 = scalar_lea.sflag [#allocation4], %s274
        %s276 = sand.u32 %s141, 1
        %s277 = smul.addr %s276, 8
        %s278 = scalar_lea.vmem [#allocation5], %s277
        %p279 = pneg %p182
        %p280 = pneg %p179
        %p281 = scmp.lt.s32.totalorder %s25, 1
        %s282 = scalar_select %p281, %s25, 1
        %p283 = scmp.lt.s32.totalorder %s26, 0
        %s284 = scalar_select %p283, %s26, 0
        %s285 = sadd.s32 %s284, %s282
        %s286 = smul.addr %s285, 8
        %s287 = scalar_lea.vmem %s5, %s286
        %p288 = scmp.lt.s32.totalorder %s25, 1
        %s289 = scalar_select %p288, %s25, 1
        %p290 = scmp.lt.s32.totalorder %s26, 0
        %s291 = scalar_select %p290, %s26, 0
        %s292 = sadd.s32 %s291, %s289
        %s293 = smul.addr %s292, 8
        %s294 = scalar_lea.vmem %s0, %s293
        %p295 = scmp.lt.s32.totalorder %s25, 1
        %s296 = scalar_select %p295, %s25, 1
        %p297 = scmp.lt.s32.totalorder %s26, 0
        %s298 = scalar_select %p297, %s26, 0
        %s299 = sadd.s32 %s298, %s296
        %s300 = smul.addr %s299, 8
        %s301 = scalar_lea.vmem %s1, %s300
        %p302 = scmp.lt.s32.totalorder %s25, 1
        %s303 = scalar_select %p302, %s25, 1
        %p304 = scmp.lt.s32.totalorder %s26, 0
        %s305 = scalar_select %p304, %s26, 0
        %s306 = sadd.s32 %s305, %s303
        %s307 = smul.addr %s306, 8
        %s308 = scalar_lea.vmem %s5, %s307
        %v309 = vld [vmem:[%s294] sm:$0xff]
        %v310 = vld [vmem:[%s301] sm:$0xff]
        %v311 = vld [vmem:[#allocation2] sm:$0xff]
        %v312 = vld [vmem:[#allocation2 + $0x8] sm:$0xff]
        %vm313 = vcmask 130048
        %v315 = vsel %vm313, %v309, 0
        %317 = vmatpush.msra.mxu0 0.0
        %318 = vmatpush.msra.mxu0 0.0
        %319 = vmatpush.msra.mxu0 0.0
        %320 = vmatpush.msra.mxu0 0.0
        %321 = vmatpush.msra.mxu0 0.0
        %322 = vmatpush.msra.mxu0 0.0
        %323 = vmatpush.msra.mxu0 0.0
        %324 = vmatpush.msra.mxu0 0.0
        %325 = vmatpush.msra.mxu0 0.0
        %326 = vmatpush.msra.mxu0 0.0
        %327 = vmatpush.msra.mxu0 0.0
        %328 = vmatpush.msra.mxu0 0.0
        %329 = vmatpush.msra.mxu0 0.0
        %330 = vmatpush.msra.mxu0 0.0
        %331 = vmatpush.msra.mxu0 %v312
        %332 = vmatpush.msra.mxu0 %v311
        %333 = vmatmul.f32.gmra.mxu0 %v315
        %v334 = vpop.f32.mrf.mxu0
        %v335 = vadd.f32 0.0, %v334
        %336 = vdwg.mxu0
        %v337 = vld [vmem:[%s3] sm:$0x1]
        %v338 = vperm.slane %v337, 0
        %v339 = vadd.f32 %v335, %v338
        %341 = vset.pattern.permute.xlu0 0
        %342 = vperm.xlu0 %341, %v310
        %v343 = vpop.permute.xlu0 %342
        %v345 = vmul.f32 %v339, %v343
        %v346 = vadd.f32 %v345, 0.0
        %348 = vrot.lane.b32.xlu0 %v338, 64
        %v349 = vpop.permute.xlu0 %348
        %v351 = vadd.f32 %v335, %v349
        %v352 = vmul.f32 %v351, %v343
        %v353 = vadd.f32 %v352, 0.0
        %v354 = vld [vmem:[%s3 + $0x1] sm:$0x1]
        %v355 = vperm.slane %v354, 0
        %357 = vrot.lane.b32.xlu0 %v355, 32
        %v358 = vpop.permute.xlu0 %357
        %v360 = vadd.f32 %v335, %v358
        %361 = vset.pattern.permute.xlu0 1
        %362 = vperm.xlu0 %361, %v310
        %v363 = vpop.permute.xlu0 %362
        %v365 = vmul.f32 %v360, %v363
        %367 = vrot.lane.b32.xlu0 %v365, 96
        %v368 = vpop.permute.xlu0 %367
        %v370 = vadd.f32 %v346, %v368
        %371 = vrot.lane.b32.xlu0 %v355, 66
        %v372 = vpop.permute.xlu0 %371
        %v374 = vadd.f32 %v335, %v372
        %v375 = vmul.f32 %v374, %v363
        %377 = vrot.lane.b32.xlu0 %v375, 126
        %v378 = vpop.permute.xlu0 %377
        %v380 = vadd.f32 %v353, %v378
        %v381 = vld [vmem:[%s3 + $0x2] sm:$0x1]
        %v382 = vperm.slane %v381, 0
        %384 = vrot.lane.b32.xlu0 %v382, 64
        %v385 = vpop.permute.xlu0 %384
        %v387 = vadd.f32 %v335, %v385
        %388 = vset.pattern.permute.xlu0 2
        %389 = vperm.xlu0 %388, %v310
        %v390 = vpop.permute.xlu0 %389
        %v392 = vmul.f32 %v387, %v390
        %394 = vrot.lane.b32.xlu0 %v392, 64
        %v395 = vpop.permute.xlu0 %394
        %v397 = vadd.f32 %v370, %v395
        %398 = vrot.lane.b32.xlu0 %v382, 68
        %v399 = vpop.permute.xlu0 %398
        %v401 = vadd.f32 %v335, %v399
        %v402 = vmul.f32 %v401, %v390
        %404 = vrot.lane.b32.xlu0 %v402, 124
        %v405 = vpop.permute.xlu0 %404
        %v407 = vadd.f32 %v380, %v405
        %vm408 = vcmask 261120
        %409 = vst.msk [vmem:[%s278] sm:$0xff] %vm408, %v397
        %411 = vrot.lane.b32.xlu0 %v407, 32
        %v412 = vpop.permute.xlu0 %411
        %vm414 = vcmask 15360
        %415 = vst.msk [vmem:[%s308] sm:$0xff] %vm414, %v412
        %s416 = sand.u32 %s141, 1
        %s417 = scalar_lea.sflag [#allocation4], %s416
        %s418 = sand.u32 %s141, 1
        %s419 = smul.addr %s418, 8
        %s420 = scalar_lea.vmem [#allocation5], %s419
        %p421 = scmp.lt.s32.totalorder %s25, 1
        %s422 = scalar_select %p421, %s25, 1
        %p423 = scmp.lt.s32.totalorder %s26, 0
        %s424 = scalar_select %p423, %s26, 0
        %s425 = sadd.s32 %s424, %s422
        %s426 = smul.addr %s425, 8
        %s427 = scalar_lea.vmem %s5, %s426
        // Predicated region
        $region41: #{tpu_custom_call.1} parent=35 // pred_check
          %p428 = pneg %p151
        $region42: #{tpu_custom_call.1} parent=35 // pred_check_branch
          %430 = sbr.rel (%p428) target = $region44
        $region43: #{tpu_custom_call.1} parent=35 // pred_region
          %432 = vsyncadd %s417, 0
          %s433 = sadd.s32 %s26, %s25
          %s434 = smul.addr %s433, 8
          %s435 = scalar_lea.hbm %s4, %s434
          %s437 = sshll.u32 %s420, 4
          %s438 = int_to_ptr.vmem [resolvable:$true] %s437
          %s439 = sshll.u32 %s435, 4
          %s440 = int_to_ptr.hbm [resolvable:$true] %s439
          %442 = dma.vmem_to_hbm [thread:$0]  %s438, 128, %s440, %s417
        $region44: #{tpu_custom_call.1} parent=35 // pred_fallthru
          _
        // Predicated region
        $region45: #{tpu_custom_call.1} parent=35 // pred_check
          %p443 = pneg %p179
        $region46: #{tpu_custom_call.1} parent=35 // pred_check_branch
          %445 = sbr.rel (%p443) target = $region48
        $region47: #{tpu_custom_call.1} parent=35 // pred_region
          _
        $region48: #{tpu_custom_call.1} parent=35 // pred_fallthru
          _
      $region36: #{tpu_custom_call.1} parent=5 // pred_fallthru
        _
      %p446 = scmp.le.s32.totalorder 2, %s16
      // Predicated region
      $region49: #{tpu_custom_call.1} parent=5 // pred_check
        %p447 = pneg %p446
      $region50: #{tpu_custom_call.1} parent=5 // pred_check_branch
        %449 = sbr.rel (%p447) target = $region52
      $region51: #{tpu_custom_call.1} parent=5 // pred_region
        %s450 = ssub.s32 %s16, 2
        // Predicated region
        $region53: #{tpu_custom_call.1} parent=51 // pred_check
          %p451 = pneg %p157
        $region54: #{tpu_custom_call.1} parent=51 // pred_check_branch
          %453 = sbr.rel (%p451) target = $region56
        $region55: #{tpu_custom_call.1} parent=51 // pred_region
          %s454 = sand.u32 %s142, 1
          %s455 = scalar_lea.sflag [#allocation4], %s454
          %s456 = sand.u32 %s142, 1
          %s457 = smul.addr %s456, 8
          %s458 = scalar_lea.vmem [#allocation5], %s457
          %460 = dma.done %s455, 128
        $region56: #{tpu_custom_call.1} parent=51 // pred_fallthru
          _
        // Predicated region
        $region57: #{tpu_custom_call.1} parent=51 // pred_check
          %p461 = pneg %p185
        $region58: #{tpu_custom_call.1} parent=51 // pred_check_branch
          %463 = sbr.rel (%p461) target = $region60
        $region59: #{tpu_custom_call.1} parent=51 // pred_region
          %p464 = scmp.lt.s32.totalorder %s27, 1
          %s465 = scalar_select %p464, %s27, 1
          %p466 = scmp.lt.s32.totalorder %s28, 0
          %s467 = scalar_select %p466, %s28, 0
          %s468 = sadd.s32 %s467, %s465
          %s469 = smul.addr %s468, 8
          %s470 = scalar_lea.vmem %s5, %s469
        $region60: #{tpu_custom_call.1} parent=51 // pred_fallthru
          _
      $region52: #{tpu_custom_call.1} parent=5 // pred_fallthru
        _
    $region6: #{tpu_custom_call.1} parent=1 // loop_footer
      %s20 = sadd.s32 1, %s16
    $region7: #{tpu_custom_call.1} parent=1 // loop_footer_branch
      %15 = sbr.rel target = $region3
    $region8: #{tpu_custom_call.1} parent=1 // loop_exit
      _
    %471 = vsyncpa [#allocation3], 1
    %s472 = scalar_lea.sflag [#allocation3], 1
    %473 = vsyncpa %s472, 1
    %474 = vsyncpa [#allocation4], 1
    %s475 = scalar_lea.sflag [#allocation4], 1
    %476 = vsyncpa %s475, 1

</llo_original>
